<compile_context>
chip_gen: v6e
topology: v6e:2x2x1
jax: 0.10.0
libtpu: 0.0.40
codegen_flags: <defaults>
</compile_context>

<pallas_src>
import jax
import jax.numpy as jnp
from jax.experimental import pallas as pl
from jax.experimental.pallas import tpu as pltpu

_LANES = 128
_FC1, _FC2, _OUT = 16, 10, 2


def _round_up(n, m):
    return ((n + m - 1) // m) * m


def _mlp_kernel(x_ref, w1_ref, b1_ref, w2_ref, b2_ref, w3_ref, b3_ref,
                fc1_ref, fc2_ref, out_ref):
    x = x_ref[...].astype(jnp.float32)

    # hidden1: Linear + ReLU. w1/b1 are zero-embedded into 128 lanes, fc1 = lanes [0:16).
    h1 = jnp.maximum(
        jnp.dot(x, w1_ref[...], preferred_element_type=jnp.float32) + b1_ref[...], 0.0)
    fc1_ref[...] = h1[:, :_FC1].astype(fc1_ref.dtype)

    # hidden2: Linear + ReLU. fc2 = lanes [0:10) (w2 occupies rows 0:16, cols 0:10).
    h2 = jnp.maximum(
        jnp.dot(h1, w2_ref[...], preferred_element_type=jnp.float32) + b2_ref[...], 0.0)
    fc2_ref[...] = h2[:, :_FC2].astype(fc2_ref.dtype)

    # classifica: Linear + Sigmoid. output = lanes [0:2); unused lanes are never
    # stored, so no lane mask / iota is needed.
    sig = jax.nn.sigmoid(
        jnp.dot(h2, w3_ref[...], preferred_element_type=jnp.float32) + b3_ref[...])
    out_ref[...] = sig[:, :_OUT].astype(out_ref.dtype)


def _pack_params(params, nfeat):
    """Zero-embed the tiny weights/biases into 128-lane slabs (all at lane offset 0)
    so each layer's matmul runs at full lane width and its result starts at lane 0."""
    w1, b1, w2, b2, w3, b3 = params
    f32 = jnp.float32
    w1p = jnp.zeros((nfeat, _LANES), f32).at[:, :_FC1].set(w1.astype(f32))
    b1p = jnp.zeros((1, _LANES), f32).at[:, :_FC1].set(b1.reshape(1, -1).astype(f32))
    w2p = jnp.zeros((_LANES, _LANES), f32).at[:_FC1, :_FC2].set(w2.astype(f32))
    b2p = jnp.zeros((1, _LANES), f32).at[:, :_FC2].set(b2.reshape(1, -1).astype(f32))
    w3p = jnp.zeros((_LANES, _LANES), f32).at[:_FC2, :_OUT].set(w3.astype(f32))
    b3p = jnp.zeros((1, _LANES), f32).at[:, :_OUT].set(b3.reshape(1, -1).astype(f32))
    return w1p, b1p, w2p, b2p, w3p, b3p


def _vmem_capacity_bytes():
    """Per-core VMEM capacity; conservative 64 MiB (v7x) fallback if unavailable."""
    try:
        cap = int(getattr(pltpu.get_tpu_info(), "vmem_capacity_bytes", 0))
        if cap > 0:
            return cap
    except Exception:
        pass
    return 64 << 20


def _pick_batch_tile(batch, nfeat, x_itemsize, pipeline_budget_bytes):
    """Largest batch tile whose padded-VMEM footprint fits the pipeline budget."""
    # bf16 needs a (16,128)-aligned batch tile; int8/fp8 (32,128); f32 only (8,128).
    gran = max(8, 32 // max(x_itemsize, 1))
    # Per-row VMEM (padded layouts):
    #   x tile          : 2 pipeline buffers x round_up(nfeat,128) x itemsize
    #   fc1/fc2/out tile: 3 outputs x 2 buffers x 128 lanes x 4 B (lane-padded in VMEM)
    #   intermediates   : ~3 live (tb,128) f32 values (h1, h2, logits/sigmoid)
    per_row = (2 * _round_up(nfeat, _LANES) * x_itemsize
               + 3 * 2 * _LANES * 4
               + 3 * _LANES * 4)
    tb = pipeline_budget_bytes // max(per_row, 1)
    tb = max(gran, min(8192, (tb // gran) * gran))
    # Keep >=2 grid steps so the "parallel" batch axis can shard across v7x's two
    # TensorCores (no effect on single-TC v5e/v6e beyond a slightly smaller tile).
    tb = min(tb, max(gran, _round_up(pl.cdiv(batch, 2), gran)))
    return tb


def mlp_classifica_forward(x, params):
    """Fused 3-layer MLP forward. Returns (fc1, fc2, output) like the PyTorch module."""
    batch, nfeat = x.shape
    packed_params = _pack_params(params, nfeat)
    w1p, b1p, w2p, b2p, w3p, b3p = packed_params
    itemsize = x.dtype.itemsize

    cap = _vmem_capacity_bytes()
    # Resident weight/bias blocks (sublane/lane padded, x2 default pipeline buffers;
    # they are grid-invariant so they are DMA'd once and stay resident).
    weight_vmem = 2 * sum(
        _round_up(a.shape[0], 8) * _round_up(a.shape[1], _LANES) * 4
        for a in packed_params)
    # ~60% of VMEM for the streaming batch pipeline; rest is headroom for weights,
    # Mosaic internal scratch and regalloc slack.
    pipeline_budget = max(4 << 20, int(cap * 0.6) - weight_vmem)
    tb = _pick_batch_tile(batch, nfeat, itemsize, pipeline_budget)
    num_tiles = pl.cdiv(batch, tb)  # ragged last block handled by Pallas (no jnp.pad)

    x_tile_vmem = 2 * tb * _round_up(nfeat, _LANES) * itemsize
    out_tile_vmem = 3 * 2 * tb * _LANES * 4
    inter_vmem = 3 * tb * _LANES * 4
    vmem_limit = weight_vmem + x_tile_vmem + out_tile_vmem + inter_vmem + (2 << 20)
    vmem_limit = int(min(max(vmem_limit, 8 << 20), int(cap * 0.9)))

    flops = 2 * batch * (nfeat * _FC1 + _FC1 * _FC2 + _FC2 * _OUT)
    bytes_accessed = int(batch * nfeat * itemsize
                         + sum(int(a.size) * a.dtype.itemsize for a in packed_params)
                         + batch * (_FC1 + _FC2 + _OUT) * 4)

    def resident(arr):
        # Full array as one block, same block index every grid step -> stays in VMEM.
        return pl.BlockSpec(arr.shape, lambda i: (0, 0))

    out_shapes = (jax.ShapeDtypeStruct((batch, _FC1), jnp.float32),
                  jax.ShapeDtypeStruct((batch, _FC2), jnp.float32),
                  jax.ShapeDtypeStruct((batch, _OUT), jnp.float32))

    fc1, fc2, output = pl.pallas_call(
        _mlp_kernel,
        out_shape=out_shapes,
        grid=(num_tiles,),
        in_specs=[
            pl.BlockSpec((tb, nfeat), lambda i: (i, 0)),
            resident(w1p), resident(b1p),
            resident(w2p), resident(b2p),
            resident(w3p), resident(b3p),
        ],
        out_specs=(
            pl.BlockSpec((tb, _FC1), lambda i: (i, 0)),
            pl.BlockSpec((tb, _FC2), lambda i: (i, 0)),
            pl.BlockSpec((tb, _OUT), lambda i: (i, 0)),
        ),
        compiler_params=pltpu.CompilerParams(
            dimension_semantics=("parallel",),
            vmem_limit_bytes=vmem_limit,
        ),
        cost_estimate=pl.CostEstimate(
            flops=flops,
            transcendentals=batch * _LANES,
            bytes_accessed=bytes_accessed,
        ),
    )(x, w1p, b1p, w2p, b2p, w3p, b3p)
    return fc1, fc2, output


def init_params(key, nfeat):
    """PyTorch nn.Linear-style init (uniform +/- 1/sqrt(fan_in)); weights stored as
    (in_features, out_features), i.e. transposed vs. torch."""
    dims = [(nfeat, _FC1), (_FC1, _FC2), (_FC2, _OUT)]
    params = []
    for fan_in, fan_out in dims:
        key, kw, kb = jax.random.split(key, 3)
        bound = 1.0 / jnp.sqrt(float(fan_in))
        w = jax.random.uniform(kw, (fan_in, fan_out), jnp.float32, -bound, bound)
        b = jax.random.uniform(kb, (1, fan_out), jnp.float32, -bound, bound)
        params += [w, b]
    return tuple(params)


def reference_forward(x, params):
    """Plain-JAX reference for correctness checking."""
    w1, b1, w2, b2, w3, b3 = params
    fc1 = jnp.maximum(x @ w1 + b1, 0.0)
    fc2 = jnp.maximum(fc1 @ w2 + b2, 0.0)
    out = jax.nn.sigmoid(fc2 @ w3 + b3)
    return fc1, fc2, out


if __name__ == "__main__":
    key = jax.random.PRNGKey(0)

    # Main check: small shapes consistent with the module.
    batch, nfeat = 8, 32
    key, kx = jax.random.split(key)
    x = jax.random.normal(kx, (batch, nfeat), jnp.float32)
    params = init_params(key, nfeat)
    fc1, fc2, output = mlp_classifica_forward(x, params)
    jax.block_until_ready((fc1, fc2, output))
    r1, r2, r3 = reference_forward(x, params)
    assert fc1.shape == (batch, 16) and fc2.shape == (batch, 10) and output.shape == (batch, 2)
    assert jnp.allclose(fc1, r1, atol=1e-5), "fc1 mismatch"
    assert jnp.allclose(fc2, r2, atol=1e-5), "fc2 mismatch"
    assert jnp.allclose(output, r3, atol=1e-5), "output mismatch"

    # Ragged tail: batch not a multiple of the batch tile (no jnp.pad path anymore).
    key, kx2 = jax.random.split(key)
    x2 = jax.random.normal(kx2, (13, 20), jnp.float32)
    params2 = init_params(key, 20)
    f1, f2, o = mlp_classifica_forward(x2, params2)
    jax.block_until_ready((f1, f2, o))
    s1, s2, s3 = reference_forward(x2, params2)
    assert jnp.allclose(f1, s1, atol=1e-5), "fc1 (tail) mismatch"
    assert jnp.allclose(f2, s2, atol=1e-5), "fc2 (tail) mismatch"
    assert jnp.allclose(o, s3, atol=1e-5), "output (tail) mismatch"

    # bf16 activation stream (dtype-aware tile granularity; halves input-side HBM read).
    key, kx3 = jax.random.split(key)
    x3 = jax.random.normal(kx3, (32, 24), jnp.float32).astype(jnp.bfloat16)
    params3 = init_params(key, 24)
    g1, g2, go = mlp_classifica_forward(x3, params3)
    jax.block_until_ready((g1, g2, go))
    t1, t2, t3 = reference_forward(x3.astype(jnp.float32), params3)
    assert jnp.allclose(g1, t1, atol=2e-2), "fc1 (bf16) mismatch"
    assert jnp.allclose(g2, t2, atol=2e-2), "fc2 (bf16) mismatch"
    assert jnp.allclose(go, t3, atol=2e-2), "output (bf16) mismatch"

    # TODO(synk): self.dropout is an unused attribute (never applied in forward) and
    # self.featuremap is Python-side caching of fc1.detach(); fc1 is returned instead.
    print("KERNEL_OK")
</pallas_src>

<mosaic_0001>
module attributes {stable_mosaic.version = 11 : i64} {
  func.func @_mlp_kernel(%arg0: i32, %arg1: memref<8x32xf32, #tpu.memory_space<vmem>>, %arg2: memref<32x128xf32, #tpu.memory_space<vmem>>, %arg3: memref<1x128xf32, #tpu.memory_space<vmem>>, %arg4: memref<128x128xf32, #tpu.memory_space<vmem>>, %arg5: memref<1x128xf32, #tpu.memory_space<vmem>>, %arg6: memref<128x128xf32, #tpu.memory_space<vmem>>, %arg7: memref<1x128xf32, #tpu.memory_space<vmem>>, %arg8: memref<8x16xf32, #tpu.memory_space<vmem>>, %arg9: memref<8x10xf32, #tpu.memory_space<vmem>>, %arg10: memref<8x2xf32, #tpu.memory_space<vmem>>) attributes {dimension_semantics = [#tpu.dimension_semantics<parallel>], iteration_bounds = array<i64: 1>, scalar_prefetch = 0 : i64, scratch_operands = 0 : i64, tpu.core_type = #tpu.core_type<tc>, window_params = [{transform_indices = @transform_0, window_bounds = array<i64: 8, 32>}, {pipeline_mode = #tpu.pipeline_mode<synchronous>, transform_indices = @transform_1, window_bounds = array<i64: 32, 128>}, {pipeline_mode = #tpu.pipeline_mode<synchronous>, transform_indices = @transform_2, window_bounds = array<i64: 1, 128>}, {pipeline_mode = #tpu.pipeline_mode<synchronous>, transform_indices = @transform_3, window_bounds = array<i64: 128, 128>}, {pipeline_mode = #tpu.pipeline_mode<synchronous>, transform_indices = @transform_4, window_bounds = array<i64: 1, 128>}, {pipeline_mode = #tpu.pipeline_mode<synchronous>, transform_indices = @transform_5, window_bounds = array<i64: 128, 128>}, {pipeline_mode = #tpu.pipeline_mode<synchronous>, transform_indices = @transform_6, window_bounds = array<i64: 1, 128>}, {transform_indices = @transform_7, window_bounds = array<i64: 8, 16>}, {transform_indices = @transform_8, window_bounds = array<i64: 8, 10>}, {transform_indices = @transform_9, window_bounds = array<i64: 8, 2>}]} {
    %c0 = arith.constant 0 : index
    %c0_0 = arith.constant 0 : index
    %0 = vector.load %arg1[%c0, %c0_0] : memref<8x32xf32, #tpu.memory_space<vmem>>, vector<8x32xf32>
    %c0_1 = arith.constant 0 : index
    %c0_2 = arith.constant 0 : index
    %1 = vector.load %arg2[%c0_1, %c0_2] : memref<32x128xf32, #tpu.memory_space<vmem>>, vector<32x128xf32>
    %cst = arith.constant dense<0.000000e+00> : vector<8x128xf32>
    %2 = tpu.matmul %0, %1, %cst {dimension_numbers = #tpu.dot_dimension_numbers<[1], [0], [0], [1], [0, 0, 1, 1], [], []>} : vector<8x32xf32>, vector<32x128xf32>, vector<8x128xf32> -> vector<8x128xf32>
    %c0_3 = arith.constant 0 : index
    %c0_4 = arith.constant 0 : index
    %3 = vector.load %arg3[%c0_3, %c0_4] : memref<1x128xf32, #tpu.memory_space<vmem>>, vector<1x128xf32>
    %4 = vector.broadcast %3 : vector<1x128xf32> to vector<8x128xf32>
    %5 = arith.addf %2, %4 : vector<8x128xf32>
    %cst_5 = arith.constant 0.000000e+00 : f32
    %6 = vector.broadcast %cst_5 : f32 to vector<8x128xf32>
    %7 = arith.maximumf %5, %6 : vector<8x128xf32>
    %8 = vector.extract_strided_slice %7 {offsets = [0, 0], sizes = [8, 16], strides = [1, 1]} : vector<8x128xf32> to vector<8x16xf32>
    %c0_6 = arith.constant 0 : index
    %c0_7 = arith.constant 0 : index
    %9 = vector.load %arg8[%c0_6, %c0_7] : memref<8x16xf32, #tpu.memory_space<vmem>>, vector<8x16xf32>
    tpu.vector_store %arg8[%c0_6, %c0_7], %8 {strides = array<i32>} : memref<8x16xf32, #tpu.memory_space<vmem>>, vector<8x16xf32>,
    %c0_8 = arith.constant 0 : index
    %c0_9 = arith.constant 0 : index
    %10 = vector.load %arg4[%c0_8, %c0_9] : memref<128x128xf32, #tpu.memory_space<vmem>>, vector<128x128xf32>
    %cst_10 = arith.constant dense<0.000000e+00> : vector<8x128xf32>
    %11 = tpu.matmul %7, %10, %cst_10 {dimension_numbers = #tpu.dot_dimension_numbers<[1], [0], [0], [1], [0, 0, 1, 1], [], []>} : vector<8x128xf32>, vector<128x128xf32>, vector<8x128xf32> -> vector<8x128xf32>
    %c0_11 = arith.constant 0 : index
    %c0_12 = arith.constant 0 : index
    %12 = vector.load %arg5[%c0_11, %c0_12] : memref<1x128xf32, #tpu.memory_space<vmem>>, vector<1x128xf32>
    %13 = vector.broadcast %12 : vector<1x128xf32> to vector<8x128xf32>
    %14 = arith.addf %11, %13 : vector<8x128xf32>
    %cst_13 = arith.constant 0.000000e+00 : f32
    %15 = vector.broadcast %cst_13 : f32 to vector<8x128xf32>
    %16 = arith.maximumf %14, %15 : vector<8x128xf32>
    %17 = vector.extract_strided_slice %16 {offsets = [0, 0], sizes = [8, 10], strides = [1, 1]} : vector<8x128xf32> to vector<8x10xf32>
    %c0_14 = arith.constant 0 : index
    %c0_15 = arith.constant 0 : index
    %18 = vector.load %arg9[%c0_14, %c0_15] : memref<8x10xf32, #tpu.memory_space<vmem>>, vector<8x10xf32>
    tpu.vector_store %arg9[%c0_14, %c0_15], %17 {strides = array<i32>} : memref<8x10xf32, #tpu.memory_space<vmem>>, vector<8x10xf32>,
    %c0_16 = arith.constant 0 : index
    %c0_17 = arith.constant 0 : index
    %19 = vector.load %arg6[%c0_16, %c0_17] : memref<128x128xf32, #tpu.memory_space<vmem>>, vector<128x128xf32>
    %cst_18 = arith.constant dense<0.000000e+00> : vector<8x128xf32>
    %20 = tpu.matmul %16, %19, %cst_18 {dimension_numbers = #tpu.dot_dimension_numbers<[1], [0], [0], [1], [0, 0, 1, 1], [], []>} : vector<8x128xf32>, vector<128x128xf32>, vector<8x128xf32> -> vector<8x128xf32>
    %c0_19 = arith.constant 0 : index
    %c0_20 = arith.constant 0 : index
    %21 = vector.load %arg7[%c0_19, %c0_20] : memref<1x128xf32, #tpu.memory_space<vmem>>, vector<1x128xf32>
    %22 = vector.broadcast %21 : vector<1x128xf32> to vector<8x128xf32>
    %23 = arith.addf %20, %22 : vector<8x128xf32>
    %24 = arith.negf %23 : vector<8x128xf32>
    %25 = math.exp %24 : vector<8x128xf32>
    %cst_21 = arith.constant 1.000000e+00 : f32
    %26 = vector.broadcast %cst_21 : f32 to vector<8x128xf32>
    %27 = arith.addf %26, %25 : vector<8x128xf32>
    %28 = arith.divf %26, %27 : vector<8x128xf32>
    %29 = vector.extract_strided_slice %28 {offsets = [0, 0], sizes = [8, 2], strides = [1, 1]} : vector<8x128xf32> to vector<8x2xf32>
    %c0_22 = arith.constant 0 : index
    %c0_23 = arith.constant 0 : index
    %30 = vector.load %arg10[%c0_22, %c0_23] : memref<8x2xf32, #tpu.memory_space<vmem>>, vector<8x2xf32>
    tpu.vector_store %arg10[%c0_22, %c0_23], %29 {strides = array<i32>} : memref<8x2xf32, #tpu.memory_space<vmem>>, vector<8x2xf32>,
    return
  }
  func.func @transform_0(%arg0: i32) -> (i32, i32) {
    %c0_i32 = arith.constant 0 : i32
    %c0_i32_0 = arith.constant 0 : i32
    return %arg0, %c0_i32 : i32, i32
  }
  func.func @transform_1(%arg0: i32) -> (i32, i32) {
    %c0_i32 = arith.constant 0 : i32
    %c0_i32_0 = arith.constant 0 : i32
    %c0_i32_1 = arith.constant 0 : i32
    return %c0_i32, %c0_i32_0 : i32, i32
  }
  func.func @transform_2(%arg0: i32) -> (i32, i32) {
    %c0_i32 = arith.constant 0 : i32
    %c0_i32_0 = arith.constant 0 : i32
    %c0_i32_1 = arith.constant 0 : i32
    return %c0_i32, %c0_i32_0 : i32, i32
  }
  func.func @transform_3(%arg0: i32) -> (i32, i32) {
    %c0_i32 = arith.constant 0 : i32
    %c0_i32_0 = arith.constant 0 : i32
    %c0_i32_1 = arith.constant 0 : i32
    return %c0_i32, %c0_i32_0 : i32, i32
  }
  func.func @transform_4(%arg0: i32) -> (i32, i32) {
    %c0_i32 = arith.constant 0 : i32
    %c0_i32_0 = arith.constant 0 : i32
    %c0_i32_1 = arith.constant 0 : i32
    return %c0_i32, %c0_i32_0 : i32, i32
  }
  func.func @transform_5(%arg0: i32) -> (i32, i32) {
    %c0_i32 = arith.constant 0 : i32
    %c0_i32_0 = arith.constant 0 : i32
    %c0_i32_1 = arith.constant 0 : i32
    return %c0_i32, %c0_i32_0 : i32, i32
  }
  func.func @transform_6(%arg0: i32) -> (i32, i32) {
    %c0_i32 = arith.constant 0 : i32
    %c0_i32_0 = arith.constant 0 : i32
    %c0_i32_1 = arith.constant 0 : i32
    return %c0_i32, %c0_i32_0 : i32, i32
  }
  func.func @transform_7(%arg0: i32) -> (i32, i32) {
    %c0_i32 = arith.constant 0 : i32
    %c0_i32_0 = arith.constant 0 : i32
    return %arg0, %c0_i32 : i32, i32
  }
  func.func @transform_8(%arg0: i32) -> (i32, i32) {
    %c0_i32 = arith.constant 0 : i32
    %c0_i32_0 = arith.constant 0 : i32
    return %arg0, %c0_i32 : i32, i32
  }
  func.func @transform_9(%arg0: i32) -> (i32, i32) {
    %c0_i32 = arith.constant 0 : i32
    %c0_i32_0 = arith.constant 0 : i32
    return %arg0, %c0_i32 : i32, i32
  }
}

</mosaic_0001>

<llo_original>
// kernel: tpu_custom_call.1
$region0: #{tpu_custom_call.1}
  #allocation0 [shape = 'u32[]', space=smem, size = 0x4, offset = 0x4, fixed_abs, tag = 'smem constant byte address 0x4 - core index']
  #allocation1 [shape = 'u32[144,128]{1,0:T(1,128)}', space=vmem, size = 0x12000, scoped, tag = 'internal scratch']
  %s0 = inlined_call_operand.hbm [shape: f32[8,32], index: 0, kind: input, shape index: {}]
  %s1 = inlined_call_operand.hbm [shape: f32[32,128], index: 1, kind: input, shape index: {}]
  %s2 = inlined_call_operand.vmem [shape: f32[1,128], index: 2, kind: input, shape index: {}]
  %s3 = inlined_call_operand.hbm [shape: f32[128,128], index: 3, kind: input, shape index: {}]
  %s4 = inlined_call_operand.vmem [shape: f32[1,128], index: 4, kind: input, shape index: {}]
  %s5 = inlined_call_operand.hbm [shape: f32[128,128], index: 5, kind: input, shape index: {}]
  %s6 = inlined_call_operand.vmem [shape: f32[1,128], index: 6, kind: input, shape index: {}]
  %s7 = inlined_call_operand.hbm [shape: f32[8,16], index: 7, kind: output, shape index: {0}]
  %s8 = inlined_call_operand.hbm [shape: f32[8,10], index: 8, kind: output, shape index: {1}]
  %s9 = inlined_call_operand.vmem [shape: f32[8,2], index: 9, kind: output, shape index: {2}]
  %10 = xla_tuple %s7, %s8, %s9
  %s11 = sld [smem:[#allocation0]]
  $region70: #{tpu_custom_call.1} parent=0
    _
  %s13 = ssub.s32 1, %s11
  %s14 = scalar_select 0, %s13, %s11
  $region1: #{tpu_custom_call.1} parent=0
    #allocation2 [shape = 'u8[4096]{0}', space=vmem, size = 0x1000, scoped, tag = 'input window, operand 0, single buffered']
    #allocation3 [shape = 's32[1]{0}', space=sflag, size = 0x4, scoped, tag = 'scoped memory for tpu_custom_call.1']
    #allocation4 [shape = 's32[1]{0}', space=sflag, size = 0x4, scoped, tag = 'scoped memory for tpu_custom_call.1']
    #allocation5 [shape = 'u8[16384]{0}', space=vmem, size = 0x4000, scoped, tag = 'input window, operand 1, single buffered']
    #allocation6 [shape = 's32[1]{0}', space=sflag, size = 0x4, scoped, tag = 'scoped memory for tpu_custom_call.1']
    #allocation7 [shape = 'u8[65536]{0}', space=vmem, size = 0x10000, scoped, tag = 'input window, operand 3, single buffered']
    #allocation8 [shape = 'u8[65536]{0}', space=vmem, size = 0x10000, scoped, tag = 'input window, operand 5, single buffered']
    #allocation9 [shape = 's32[1]{0}', space=sflag, size = 0x4, scoped, tag = 'scoped memory for tpu_custom_call.1']
    #allocation10 [shape = 'u8[4096]{0}', space=vmem, size = 0x1000, scoped, tag = 'output window, operand 0, single buffered']
    #allocation11 [shape = 'u8[4096]{0}', space=vmem, size = 0x1000, scoped, tag = 'output window, operand 1, single buffered']
    #allocation12 [shape = 's32[1]{0}', space=sflag, size = 0x4, scoped, tag = 'scoped memory for tpu_custom_call.1']
    %15 = vsyncpa [#allocation3], 0
    %16 = vsyncpa [#allocation6], 0
    %17 = vsyncpa [#allocation9], 0
    %18 = vsyncpa [#allocation4], 0
    %19 = vsyncpa [#allocation12], 0
    // Predicated region
    $region2: #{tpu_custom_call.1} parent=1 // pred_check
      _
    $region3: #{tpu_custom_call.1} parent=1 // pred_check_branch
      %21 = sbr.rel (0) target = $region5
    $region4: #{tpu_custom_call.1} parent=1 // pred_region
      %s23 = ssub.s32 128, 128
      %24 = vsyncadd [#allocation3], %s23
      %s26 = sshll.u32 [#allocation2], 4
      %s27 = int_to_ptr.vmem [resolvable:$true] %s26
      %29 = dma.hbm_to_vmem [thread:$0]  %s0, 128, %s27, [#allocation3]
    $region5: #{tpu_custom_call.1} parent=1 // pred_fallthru
      _
    // Predicated region
    $region6: #{tpu_custom_call.1} parent=1 // pred_check
      _
    $region7: #{tpu_custom_call.1} parent=1 // pred_check_branch
      %31 = sbr.rel (0) target = $region9
    $region8: #{tpu_custom_call.1} parent=1 // pred_region
      %s33 = ssub.s32 512, 512
      %34 = vsyncadd [#allocation6], %s33
      %s35 = sshll.u32 [#allocation5], 4
      %s36 = int_to_ptr.vmem [resolvable:$true] %s35
      %41 = dma.hbm_to_vmem [thread:$0]  %s1, 512, %s36, [#allocation6], 128, 128, 8
    $region9: #{tpu_custom_call.1} parent=1 // pred_fallthru
      _
    // Predicated region
    $region10: #{tpu_custom_call.1} parent=1 // pred_check
      _
    $region11: #{tpu_custom_call.1} parent=1 // pred_check_branch
      %43 = sbr.rel (0) target = $region13
    $region12: #{tpu_custom_call.1} parent=1 // pred_region
      _
    $region13: #{tpu_custom_call.1} parent=1 // pred_fallthru
      _
    // Predicated region
    $region14: #{tpu_custom_call.1} parent=1 // pred_check
      _
    $region15: #{tpu_custom_call.1} parent=1 // pred_check_branch
      %45 = sbr.rel (0) target = $region17
    $region16: #{tpu_custom_call.1} parent=1 // pred_region
      %s47 = ssub.s32 2048, 2048
      %48 = vsyncadd [#allocation6], %s47
      %s49 = sshll.u32 [#allocation7], 4
      %s50 = int_to_ptr.vmem [resolvable:$true] %s49
      %55 = dma.hbm_to_vmem [thread:$0]  %s3, 2048, %s50, [#allocation6], 128, 128, 8
    $region17: #{tpu_custom_call.1} parent=1 // pred_fallthru
      _
    // Predicated region
    $region18: #{tpu_custom_call.1} parent=1 // pred_check
      _
    $region19: #{tpu_custom_call.1} parent=1 // pred_check_branch
      %57 = sbr.rel (0) target = $region21
    $region20: #{tpu_custom_call.1} parent=1 // pred_region
      _
    $region21: #{tpu_custom_call.1} parent=1 // pred_fallthru
      _
    // Predicated region
    $region22: #{tpu_custom_call.1} parent=1 // pred_check
      _
    $region23: #{tpu_custom_call.1} parent=1 // pred_check_branch
      %59 = sbr.rel (0) target = $region25
    $region24: #{tpu_custom_call.1} parent=1 // pred_region
      %s61 = ssub.s32 2048, 2048
      %62 = vsyncadd [#allocation9], %s61
      %s63 = sshll.u32 [#allocation8], 4
      %s64 = int_to_ptr.vmem [resolvable:$true] %s63
      %69 = dma.hbm_to_vmem [thread:$0]  %s5, 2048, %s64, [#allocation9], 128, 128, 8
    $region25: #{tpu_custom_call.1} parent=1 // pred_fallthru
      _
    // Predicated region
    $region26: #{tpu_custom_call.1} parent=1 // pred_check
      _
    $region27: #{tpu_custom_call.1} parent=1 // pred_check_branch
      %71 = sbr.rel (0) target = $region29
    $region28: #{tpu_custom_call.1} parent=1 // pred_region
      _
    $region29: #{tpu_custom_call.1} parent=1 // pred_fallthru
      _
    // Predicated region
    $region30: #{tpu_custom_call.1} parent=1 // pred_check
      _
    $region31: #{tpu_custom_call.1} parent=1 // pred_check_branch
      %73 = sbr.rel (0) target = $region33
    $region32: #{tpu_custom_call.1} parent=1 // pred_region
      %74 = dma.done [#allocation3], 128
    $region33: #{tpu_custom_call.1} parent=1 // pred_fallthru
      _
    // Predicated region
    $region34: #{tpu_custom_call.1} parent=1 // pred_check
      _
    $region35: #{tpu_custom_call.1} parent=1 // pred_check_branch
      %76 = sbr.rel (0) target = $region37
    $region36: #{tpu_custom_call.1} parent=1 // pred_region
      %77 = dma.done [#allocation6], 512
    $region37: #{tpu_custom_call.1} parent=1 // pred_fallthru
      _
    // Predicated region
    $region38: #{tpu_custom_call.1} parent=1 // pred_check
      _
    $region39: #{tpu_custom_call.1} parent=1 // pred_check_branch
      %79 = sbr.rel (0) target = $region41
    $region40: #{tpu_custom_call.1} parent=1 // pred_region
      %80 = dma.done [#allocation6], 2048
    $region41: #{tpu_custom_call.1} parent=1 // pred_fallthru
      _
    // Predicated region
    $region42: #{tpu_custom_call.1} parent=1 // pred_check
      _
    $region43: #{tpu_custom_call.1} parent=1 // pred_check_branch
      %82 = sbr.rel (0) target = $region45
    $region44: #{tpu_custom_call.1} parent=1 // pred_region
      %83 = dma.done [#allocation9], 2048
    $region45: #{tpu_custom_call.1} parent=1 // pred_fallthru
      _
    %v84 = vld [vmem:[#allocation2] sm:$0xff]
    %v85 = vld [vmem:[#allocation5] sm:$0xff]
    %v86 = vld [vmem:[#allocation5 + $0x8] sm:$0xff]
    %v87 = vld [vmem:[#allocation5 + $0x10] sm:$0xff]
    %v88 = vld [vmem:[#allocation5 + $0x18] sm:$0xff]
    %v89 = vld [vmem:[%s2] sm:$0x1]
    %v91 = vlaneseq
    %v92 = vshrl.u32 %v91, 7
    %v93 = vsub.s32 0, %v92
    %v94 = vrot.slane %v89, %v93
    %vm96 = vcmask 261120
    %v98 = vsel %vm96, %v84, 0
    %100 = vmatprep.subr.mxu0 0.0
    %101 = vmatpush1.msra.mxu0 0.0
    %102 = vmatprep.subr.mxu0 0.0
    %103 = vmatpush1.msra.mxu0 0.0
    %104 = vmatprep.subr.mxu0 0.0
    %105 = vmatpush1.msra.mxu0 0.0
    %106 = vmatprep.subr.mxu0 0.0
    %107 = vmatpush1.msra.mxu0 0.0
    %108 = vmatprep.subr.mxu0 0.0
    %109 = vmatpush1.msra.mxu0 0.0
    %110 = vmatprep.subr.mxu0 0.0
    %111 = vmatpush1.msra.mxu0 0.0
    %112 = vmatprep.subr.mxu0 0.0
    %113 = vmatpush1.msra.mxu0 0.0
    %114 = vmatprep.subr.mxu0 0.0
    %115 = vmatpush1.msra.mxu0 0.0
    %116 = vmatprep.subr.mxu0 0.0
    %117 = vmatpush1.msra.mxu0 0.0
    %118 = vmatprep.subr.mxu0 0.0
    %119 = vmatpush1.msra.mxu0 0.0
    %120 = vmatprep.subr.mxu0 0.0
    %121 = vmatpush1.msra.mxu0 0.0
    %122 = vmatprep.subr.mxu0 0.0
    %123 = vmatpush1.msra.mxu0 0.0
    %124 = vmatprep.subr.mxu0 0.0
    %125 = vmatpush1.msra.mxu0 %v88
    %126 = vmatprep.subr.mxu0 0.0
    %127 = vmatpush1.msra.mxu0 %v87
    %128 = vmatprep.subr.mxu0 0.0
    %129 = vmatpush1.msra.mxu0 %v86
    %130 = vmatprep.subr.mxu0 0.0
    %131 = vmatpush1.msra.mxu0 %v85
    %132 = vmatprep.subr.mxu0 0.0
    %133 = vmatpush2.msra.mxu0 0.0
    %134 = vmatprep.subr.mxu0 0.0
    %135 = vmatpush2.msra.mxu0 0.0
    %136 = vmatprep.subr.mxu0 0.0
    %137 = vmatpush2.msra.mxu0 0.0
    %138 = vmatprep.subr.mxu0 0.0
    %139 = vmatpush2.msra.mxu0 0.0
    %140 = vmatprep.subr.mxu0 0.0
    %141 = vmatpush2.msra.mxu0 0.0
    %142 = vmatprep.subr.mxu0 0.0
    %143 = vmatpush2.msra.mxu0 0.0
    %144 = vmatprep.subr.mxu0 0.0
    %145 = vmatpush2.msra.mxu0 0.0
    %146 = vmatprep.subr.mxu0 0.0
    %147 = vmatpush2.msra.mxu0 0.0
    %148 = vmatprep.subr.mxu0 0.0
    %149 = vmatpush2.msra.mxu0 0.0
    %150 = vmatprep.subr.mxu0 0.0
    %151 = vmatpush2.msra.mxu0 0.0
    %152 = vmatprep.subr.mxu0 0.0
    %153 = vmatpush2.msra.mxu0 0.0
    %154 = vmatprep.subr.mxu0 0.0
    %155 = vmatpush2.msra.mxu0 0.0
    %156 = vmatprep.subr.mxu0 0.0
    %157 = vmatpush2.msra.mxu0 0.0
    %158 = vmatprep.subr.mxu0 0.0
    %159 = vmatpush2.msra.mxu0 0.0
    %160 = vmatprep.subr.mxu0 0.0
    %161 = vmatpush2.msra.mxu0 0.0
    %162 = vmatprep.subr.mxu0 0.0
    %163 = vmatpush2.msra.mxu0 0.0
    %164 = vmatprep.mubr.f32.mxu0 0.0
    %165 = vmatmul.mubr.f32.gmra.mxu0 %v98
    %v166 = vpop.f32.mrf.mxu0
    %v167 = vadd.f32 %v94, %v166
    %v168 = vpop.f32.mrf.mxu0
    %169 = vdwg.mxu0
    %v170 = vmax.f32 %v167, 0.0
    %vm171 = vcmask 130048
    %172 = vst.msk [vmem:[#allocation10] sm:$0xff] %vm171, %v170
    %v173 = vld [vmem:[#allocation7] sm:$0xff]
    %v174 = vld [vmem:[#allocation7 + $0x8] sm:$0xff]
    %v175 = vld [vmem:[#allocation7 + $0x10] sm:$0xff]
    %v176 = vld [vmem:[#allocation7 + $0x18] sm:$0xff]
    %v177 = vld [vmem:[#allocation7 + $0x20] sm:$0xff]
    %v178 = vld [vmem:[#allocation7 + $0x28] sm:$0xff]
    %v179 = vld [vmem:[#allocation7 + $0x30] sm:$0xff]
    %v180 = vld [vmem:[#allocation7 + $0x38] sm:$0xff]
    %v181 = vld [vmem:[#allocation7 + $0x40] sm:$0xff]
    %v182 = vld [vmem:[#allocation7 + $0x48] sm:$0xff]
    %v183 = vld [vmem:[#allocation7 + $0x50] sm:$0xff]
    %v184 = vld [vmem:[#allocation7 + $0x58] sm:$0xff]
    %v185 = vld [vmem:[#allocation7 + $0x60] sm:$0xff]
    %v186 = vld [vmem:[#allocation7 + $0x68] sm:$0xff]
    %v187 = vld [vmem:[#allocation7 + $0x70] sm:$0xff]
    %v188 = vld [vmem:[#allocation7 + $0x78] sm:$0xff]
    %v189 = vld [vmem:[%s4] sm:$0x1]
    %v191 = vlaneseq
    %v192 = vshrl.u32 %v191, 7
    %v193 = vsub.s32 0, %v192
    %v194 = vrot.slane %v189, %v193
    %196 = vmatprep.subr.mxu0 0.0
    %197 = vmatpush1.msra.mxu0 %v188
    %198 = vmatprep.subr.mxu0 0.0
    %199 = vmatpush1.msra.mxu0 %v187
    %200 = vmatprep.subr.mxu0 0.0
    %201 = vmatpush1.msra.mxu0 %v186
    %202 = vmatprep.subr.mxu0 0.0
    %203 = vmatpush1.msra.mxu0 %v185
    %204 = vmatprep.subr.mxu0 0.0
    %205 = vmatpush1.msra.mxu0 %v184
    %206 = vmatprep.subr.mxu0 0.0
    %207 = vmatpush1.msra.mxu0 %v183
    %208 = vmatprep.subr.mxu0 0.0
    %209 = vmatpush1.msra.mxu0 %v182
    %210 = vmatprep.subr.mxu0 0.0
    %211 = vmatpush1.msra.mxu0 %v181
    %212 = vmatprep.subr.mxu0 0.0
    %213 = vmatpush1.msra.mxu0 %v180
    %214 = vmatprep.subr.mxu0 0.0
    %215 = vmatpush1.msra.mxu0 %v179
    %216 = vmatprep.subr.mxu0 0.0
    %217 = vmatpush1.msra.mxu0 %v178
    %218 = vmatprep.subr.mxu0 0.0
    %219 = vmatpush1.msra.mxu0 %v177
    %220 = vmatprep.subr.mxu0 0.0
    %221 = vmatpush1.msra.mxu0 %v176
    %222 = vmatprep.subr.mxu0 0.0
    %223 = vmatpush1.msra.mxu0 %v175
    %224 = vmatprep.subr.mxu0 0.0
    %225 = vmatpush1.msra.mxu0 %v174
    %226 = vmatprep.subr.mxu0 0.0
    %227 = vmatpush1.msra.mxu0 %v173
    %228 = vmatprep.subr.mxu0 0.0
    %229 = vmatpush2.msra.mxu0 0.0
    %230 = vmatprep.subr.mxu0 0.0
    %231 = vmatpush2.msra.mxu0 0.0
    %232 = vmatprep.subr.mxu0 0.0
    %233 = vmatpush2.msra.mxu0 0.0
    %234 = vmatprep.subr.mxu0 0.0
    %235 = vmatpush2.msra.mxu0 0.0
    %236 = vmatprep.subr.mxu0 0.0
    %237 = vmatpush2.msra.mxu0 0.0
    %238 = vmatprep.subr.mxu0 0.0
    %239 = vmatpush2.msra.mxu0 0.0
    %240 = vmatprep.subr.mxu0 0.0
    %241 = vmatpush2.msra.mxu0 0.0
    %242 = vmatprep.subr.mxu0 0.0
    %243 = vmatpush2.msra.mxu0 0.0
    %244 = vmatprep.subr.mxu0 0.0
    %245 = vmatpush2.msra.mxu0 0.0
    %246 = vmatprep.subr.mxu0 0.0
    %247 = vmatpush2.msra.mxu0 0.0
    %248 = vmatprep.subr.mxu0 0.0
    %249 = vmatpush2.msra.mxu0 0.0
    %250 = vmatprep.subr.mxu0 0.0
    %251 = vmatpush2.msra.mxu0 0.0
    %252 = vmatprep.subr.mxu0 0.0
    %253 = vmatpush2.msra.mxu0 0.0
    %254 = vmatprep.subr.mxu0 0.0
    %255 = vmatpush2.msra.mxu0 0.0
    %256 = vmatprep.subr.mxu0 0.0
    %257 = vmatpush2.msra.mxu0 0.0
    %258 = vmatprep.subr.mxu0 0.0
    %259 = vmatpush2.msra.mxu0 0.0
    %260 = vmatprep.mubr.f32.mxu0 0.0
    %261 = vmatmul.mubr.f32.gmra.mxu0 %v170
    %v262 = vpop.f32.mrf.mxu0
    %v263 = vadd.f32 %v194, %v262
    %v264 = vpop.f32.mrf.mxu0
    %265 = vdwg.mxu0
    %v266 = vmax.f32 %v263, 0.0
    %vm267 = vcmask 80896
    %268 = vst.msk [vmem:[#allocation11] sm:$0xff] %vm267, %v266
    %v269 = vld [vmem:[#allocation8] sm:$0xff]
    %v270 = vld [vmem:[#allocation8 + $0x8] sm:$0xff]
    %v271 = vld [vmem:[#allocation8 + $0x10] sm:$0xff]
    %v272 = vld [vmem:[#allocation8 + $0x18] sm:$0xff]
    %v273 = vld [vmem:[#allocation8 + $0x20] sm:$0xff]
    %v274 = vld [vmem:[#allocation8 + $0x28] sm:$0xff]
    %v275 = vld [vmem:[#allocation8 + $0x30] sm:$0xff]
    %v276 = vld [vmem:[#allocation8 + $0x38] sm:$0xff]
    %v277 = vld [vmem:[#allocation8 + $0x40] sm:$0xff]
    %v278 = vld [vmem:[#allocation8 + $0x48] sm:$0xff]
    %v279 = vld [vmem:[#allocation8 + $0x50] sm:$0xff]
    %v280 = vld [vmem:[#allocation8 + $0x58] sm:$0xff]
    %v281 = vld [vmem:[#allocation8 + $0x60] sm:$0xff]
    %v282 = vld [vmem:[#allocation8 + $0x68] sm:$0xff]
    %v283 = vld [vmem:[#allocation8 + $0x70] sm:$0xff]
    %v284 = vld [vmem:[#allocation8 + $0x78] sm:$0xff]
    %v285 = vld [vmem:[%s6] sm:$0x1]
    %v287 = vlaneseq
    %v288 = vshrl.u32 %v287, 7
    %v289 = vsub.s32 0, %v288
    %v290 = vrot.slane %v285, %v289
    %292 = vmatprep.subr.mxu0 0.0
    %293 = vmatpush1.msra.mxu0 %v284
    %294 = vmatprep.subr.mxu0 0.0
    %295 = vmatpush1.msra.mxu0 %v283
    %296 = vmatprep.subr.mxu0 0.0
    %297 = vmatpush1.msra.mxu0 %v282
    %298 = vmatprep.subr.mxu0 0.0
    %299 = vmatpush1.msra.mxu0 %v281
    %300 = vmatprep.subr.mxu0 0.0
    %301 = vmatpush1.msra.mxu0 %v280
    %302 = vmatprep.subr.mxu0 0.0
    %303 = vmatpush1.msra.mxu0 %v279
    %304 = vmatprep.subr.mxu0 0.0
    %305 = vmatpush1.msra.mxu0 %v278
    %306 = vmatprep.subr.mxu0 0.0
    %307 = vmatpush1.msra.mxu0 %v277
    %308 = vmatprep.subr.mxu0 0.0
    %309 = vmatpush1.msra.mxu0 %v276
    %310 = vmatprep.subr.mxu0 0.0
    %311 = vmatpush1.msra.mxu0 %v275
    %312 = vmatprep.subr.mxu0 0.0
    %313 = vmatpush1.msra.mxu0 %v274
    %314 = vmatprep.subr.mxu0 0.0
    %315 = vmatpush1.msra.mxu0 %v273
    %316 = vmatprep.subr.mxu0 0.0
    %317 = vmatpush1.msra.mxu0 %v272
    %318 = vmatprep.subr.mxu0 0.0
    %319 = vmatpush1.msra.mxu0 %v271
    %320 = vmatprep.subr.mxu0 0.0
    %321 = vmatpush1.msra.mxu0 %v270
    %322 = vmatprep.subr.mxu0 0.0
    %323 = vmatpush1.msra.mxu0 %v269
    %324 = vmatprep.subr.mxu0 0.0
    %325 = vmatpush2.msra.mxu0 0.0
    %326 = vmatprep.subr.mxu0 0.0
    %327 = vmatpush2.msra.mxu0 0.0
    %328 = vmatprep.subr.mxu0 0.0
    %329 = vmatpush2.msra.mxu0 0.0
    %330 = vmatprep.subr.mxu0 0.0
    %331 = vmatpush2.msra.mxu0 0.0
    %332 = vmatprep.subr.mxu0 0.0
    %333 = vmatpush2.msra.mxu0 0.0
    %334 = vmatprep.subr.mxu0 0.0
    %335 = vmatpush2.msra.mxu0 0.0
    %336 = vmatprep.subr.mxu0 0.0
    %337 = vmatpush2.msra.mxu0 0.0
    %338 = vmatprep.subr.mxu0 0.0
    %339 = vmatpush2.msra.mxu0 0.0
    %340 = vmatprep.subr.mxu0 0.0
    %341 = vmatpush2.msra.mxu0 0.0
    %342 = vmatprep.subr.mxu0 0.0
    %343 = vmatpush2.msra.mxu0 0.0
    %344 = vmatprep.subr.mxu0 0.0
    %345 = vmatpush2.msra.mxu0 0.0
    %346 = vmatprep.subr.mxu0 0.0
    %347 = vmatpush2.msra.mxu0 0.0
    %348 = vmatprep.subr.mxu0 0.0
    %349 = vmatpush2.msra.mxu0 0.0
    %350 = vmatprep.subr.mxu0 0.0
    %351 = vmatpush2.msra.mxu0 0.0
    %352 = vmatprep.subr.mxu0 0.0
    %353 = vmatpush2.msra.mxu0 0.0
    %354 = vmatprep.subr.mxu0 0.0
    %355 = vmatpush2.msra.mxu0 0.0
    %356 = vmatprep.mubr.f32.mxu0 0.0
    %357 = vmatmul.mubr.f32.gmra.mxu0 %v266
    %v358 = vpop.f32.mrf.mxu0
    %v359 = vadd.f32 %v290, %v358
    %v360 = vpop.f32.mrf.mxu0
    %361 = vdwg.mxu0
    %v362 = vxor.u32 %v359, 2147483648
    %v363 = vmul.f32 %v362, 1.442695
    %v364 = vpow.pop %v363
    %v365 = vadd.f32 %v364, 1.0
    %v366 = vrcp.pop %v365
    %v367 = vmul.f32 1.0, %v366
    %vm368 = vcmask 15360
    %369 = vst.msk [vmem:[%s9] sm:$0xff] %vm368, %v367
    // Predicated region
    $region46: #{tpu_custom_call.1} parent=1 // pred_check
      _
    $region47: #{tpu_custom_call.1} parent=1 // pred_check_branch
      %371 = sbr.rel (0) target = $region49
    $region48: #{tpu_custom_call.1} parent=1 // pred_region
      %s373 = ssub.s32 128, 128
      %374 = vsyncadd [#allocation4], %s373
      %s376 = sshll.u32 [#allocation10], 4
      %s377 = int_to_ptr.vmem [resolvable:$true] %s376
      %379 = dma.vmem_to_hbm [thread:$0]  %s377, 128, %s7, [#allocation4]
    $region49: #{tpu_custom_call.1} parent=1 // pred_fallthru
      _
    // Predicated region
    $region50: #{tpu_custom_call.1} parent=1 // pred_check
      _
    $region51: #{tpu_custom_call.1} parent=1 // pred_check_branch
      %381 = sbr.rel (0) target = $region53
    $region52: #{tpu_custom_call.1} parent=1 // pred_region
      %s383 = ssub.s32 128, 128
      %384 = vsyncadd [#allocation12], %s383
      %s386 = sshll.u32 [#allocation11], 4
      %s387 = int_to_ptr.vmem [resolvable:$true] %s386
      %389 = dma.vmem_to_hbm [thread:$0]  %s387, 128, %s8, [#allocation12]
    $region53: #{tpu_custom_call.1} parent=1 // pred_fallthru
      _
    // Predicated region
    $region54: #{tpu_custom_call.1} parent=1 // pred_check
      _
    $region55: #{tpu_custom_call.1} parent=1 // pred_check_branch
      %391 = sbr.rel (0) target = $region57
    $region56: #{tpu_custom_call.1} parent=1 // pred_region
      _
    $region57: #{tpu_custom_call.1} parent=1 // pred_fallthru
      _
    // Predicated region
    $region58: #{tpu_custom_call.1} parent=1 // pred_check
      _
    $region59: #{tpu_custom_call.1} parent=1 // pred_check_branch
      %393 = sbr.rel (0) target = $region61
    $region60: #{tpu_custom_call.1} parent=1 // pred_region
      %394 = dma.done [#allocation4], 128
    $region61: #{tpu_custom_call.1} parent=1 // pred_fallthru
      _
    // Predicated region
    $region62: #{tpu_custom_call.1} parent=1 // pred_check
      _
    $region63: #{tpu_custom_call.1} parent=1 // pred_check_branch
      %396 = sbr.rel (0) target = $region65
    $region64: #{tpu_custom_call.1} parent=1 // pred_region
      %397 = dma.done [#allocation12], 128
    $region65: #{tpu_custom_call.1} parent=1 // pred_fallthru
      _
    // Predicated region
    $region66: #{tpu_custom_call.1} parent=1 // pred_check
      _
    $region67: #{tpu_custom_call.1} parent=1 // pred_check_branch
      %399 = sbr.rel (0) target = $region69
    $region68: #{tpu_custom_call.1} parent=1 // pred_region
      _
    $region69: #{tpu_custom_call.1} parent=1 // pred_fallthru
      _
    %400 = vsyncpa [#allocation3], 1
    %401 = vsyncpa [#allocation6], 1
    %402 = vsyncpa [#allocation9], 1
    %403 = vsyncpa [#allocation4], 1
    %404 = vsyncpa [#allocation12], 1

</llo_original>
